<compile_context>
chip_gen: v6e
topology: v6e:2x2x1
jax: 0.10.0
libtpu: 0.0.40
codegen_flags: <defaults>
</compile_context>

<pallas_src>
import functools

import jax
import jax.numpy as jnp
from jax.experimental import pallas as pl
from jax.experimental.pallas import tpu as pltpu


def _gray_loss_kernel(x_ref, out_ref, acc_ref, *, n_elems):
    c = pl.program_id(0)               # outer split (megacore-parallel on v7x)
    i = pl.program_id(1)               # reduction step ("arbitrary")
    tiles_per_split = pl.num_programs(1)
    tile_rows, lanes = x_ref.shape

    @pl.when(i == 0)
    def _():
        acc_ref[...] = jnp.zeros_like(acc_ref)

    x = x_ref[...].astype(jnp.float32)

    # Global element index of every element in this block; mask everything at
    # or after n_elems (lane padding, partial last block, OOB block padding).
    row0 = (c * tiles_per_split + i) * tile_rows
    row_iota = jax.lax.broadcasted_iota(jnp.int32, (tile_rows, lanes), 0)
    lane_iota = jax.lax.broadcasted_iota(jnp.int32, (tile_rows, lanes), 1)
    idx = (row0 + row_iota) * lanes + lane_iota
    vals = jnp.where(idx < n_elems, jnp.abs(x - 0.5), 0.0)

    # Sublane-only reduce keeps the lane axis: per-step work is mostly plain
    # VPU adds; the single cross-lane reduce happens once at the end.
    acc_ref[...] += jnp.sum(vals, axis=0, keepdims=True)

    @pl.when(i == tiles_per_split - 1)
    def _():
        out_ref[...] = jnp.sum(acc_ref[...]).reshape(1, 1)


def gray_loss(x, *, tile_rows=2048, lanes=128):
    """Pallas equivalent of GrayLoss.forward: 1 / mean(|x - 0.5|)."""
    n_elems = x.size
    flat = x.reshape(-1)               # keep native dtype; no full-tensor copy

    # Only pad (cheaply) to a lane multiple when needed; the padded tail is
    # masked inside the kernel so the pad value is irrelevant.
    rem = n_elems % lanes
    if rem != 0:
        flat = jnp.pad(flat, (0, lanes - rem))
    rows = flat.shape[0] // lanes
    x2d = flat.reshape(rows, lanes)

    # Big blocks: (2048, 128) f32 = 1 MiB (2 MiB double-buffered) fits the
    # default scoped VMEM on v5e/v6e/v7x. Clamp for small inputs, keeping a
    # multiple of 8 sublanes.
    tile_rows = max(8, min(tile_rows, pl.cdiv(rows, 8) * 8))
    num_tiles = pl.cdiv(rows, tile_rows)

    # Shard the reduction over two outer programs when it divides evenly:
    # uses both TensorCores on v7x; just a cheap serial outer loop on
    # single-TC v5e/v6e.
    n_split = 2 if (num_tiles >= 2 and num_tiles % 2 == 0) else 1
    tiles_per_split = num_tiles // n_split

    def in_index_map(c, i):
        return (c * tiles_per_split + i, 0)

    def out_index_map(c, i):
        return (c, 0)

    kernel = functools.partial(_gray_loss_kernel, n_elems=n_elems)

    partial_sums = pl.pallas_call(
        kernel,
        out_shape=jax.ShapeDtypeStruct((n_split, 1), jnp.float32),
        grid_spec=pltpu.PrefetchScalarGridSpec(
            num_scalar_prefetch=0,
            grid=(n_split, tiles_per_split),
            in_specs=[pl.BlockSpec((tile_rows, lanes), in_index_map)],
            out_specs=pl.BlockSpec((1, 1), out_index_map),
            scratch_shapes=[pltpu.VMEM((1, lanes), jnp.float32)],
        ),
        compiler_params=pltpu.CompilerParams(
            dimension_semantics=("parallel", "arbitrary")),
        cost_estimate=pl.CostEstimate(
            flops=2 * n_elems,
            transcendentals=0,
            bytes_accessed=int(x.dtype.itemsize) * n_elems + 8),
    )(x2d)

    abs_sum = jnp.sum(partial_sums)
    mean_abs = abs_sum / jnp.float32(n_elems)   # nn.L1Loss default 'mean'
    return 1.0 / mean_abs


if __name__ == "__main__":
    key = jax.random.PRNGKey(0)
    # Small shape consistent with a segmentation-mask input (NCHW).
    x = jax.random.uniform(key, (2, 4, 16, 16), dtype=jnp.float32)

    out = gray_loss(x)
    jax.block_until_ready(out)
    ref = 1.0 / jnp.mean(jnp.abs(x - 0.5))
    assert jnp.allclose(out, ref, rtol=1e-5, atol=1e-5), (out, ref)

    # Extra check: awkward size exercises in-kernel tail masking (n % 128 != 0
    # and a partial last block).
    x2 = jax.random.uniform(jax.random.PRNGKey(1), (3, 3, 7, 5),
                            dtype=jnp.float32)
    out2 = gray_loss(x2)
    jax.block_until_ready(out2)
    ref2 = 1.0 / jnp.mean(jnp.abs(x2 - 0.5))
    assert jnp.allclose(out2, ref2, rtol=1e-5, atol=1e-5), (out2, ref2)

    print("KERNEL_OK")
</pallas_src>

<mosaic_0001>
module attributes {stable_mosaic.version = 11 : i64} {
  func.func @_gray_loss_kernel(%arg0: i32, %arg1: i32, %arg2: memref<16x128xf32, #tpu.memory_space<vmem>>, %arg3: memref<1x1xf32, #tpu.memory_space<vmem>>, %arg4: memref<1x128xf32, #tpu.memory_space<vmem>>) attributes {dimension_semantics = [#tpu.dimension_semantics<parallel>, #tpu.dimension_semantics<arbitrary>], iteration_bounds = array<i64: 1, 1>, scalar_prefetch = 0 : i64, scratch_operands = 1 : i64, tpu.core_type = #tpu.core_type<tc>, window_params = [{transform_indices = @transform_0, window_bounds = array<i64: 16, 128>}, {transform_indices = @transform_1, window_bounds = array<i64: 1, 1>}]} {
    %c0_i32 = arith.constant 0 : i32
    %0 = arith.cmpi eq, %arg1, %c0_i32 : i32
    %1 = arith.extui %0 : i1 to i32
    %c0_i32_0 = arith.constant 0 : i32
    %2 = arith.cmpi ne, %1, %c0_i32_0 : i32
    scf.if %2 {
      %cst_10 = arith.constant 0.000000e+00 : f32
      %29 = vector.broadcast %cst_10 : f32 to vector<1x128xf32>
      %c0_11 = arith.constant 0 : index
      %c0_12 = arith.constant 0 : index
      %30 = vector.load %arg4[%c0_11, %c0_12] : memref<1x128xf32, #tpu.memory_space<vmem>>, vector<1x128xf32>
      tpu.vector_store %arg4[%c0_11, %c0_12], %29 {strides = array<i32>} : memref<1x128xf32, #tpu.memory_space<vmem>>, vector<1x128xf32>,
    } else {
    }
    %c0 = arith.constant 0 : index
    %c0_1 = arith.constant 0 : index
    %3 = vector.load %arg2[%c0, %c0_1] : memref<16x128xf32, #tpu.memory_space<vmem>>, vector<16x128xf32>
    %c1_i32 = arith.constant 1 : i32
    %4 = arith.muli %arg0, %c1_i32 : i32
    %5 = arith.addi %4, %arg1 : i32
    %c16_i32 = arith.constant 16 : i32
    %6 = arith.muli %5, %c16_i32 : i32
    %7 = tpu.iota {dimensions = array<i32: 0>} : vector<16x128xi32>
    %8 = tpu.iota {dimensions = array<i32: 1>} : vector<16x128xi32>
    %9 = vector.broadcast %6 : i32 to vector<16x128xi32>
    %10 = arith.addi %9, %7 : vector<16x128xi32>
    %c128_i32 = arith.constant 128 : i32
    %11 = vector.broadcast %c128_i32 : i32 to vector<16x128xi32>
    %12 = arith.muli %10, %11 : vector<16x128xi32>
    %13 = arith.addi %12, %8 : vector<16x128xi32>
    %c2048_i32 = arith.constant 2048 : i32
    %14 = vector.broadcast %c2048_i32 : i32 to vector<16x128xi32>
    %15 = arith.cmpi slt, %13, %14 : vector<16x128xi32>
    %cst = arith.constant 5.000000e-01 : f32
    %16 = vector.broadcast %cst : f32 to vector<16x128xf32>
    %17 = arith.subf %3, %16 : vector<16x128xf32>
    %18 = math.absf %17 : vector<16x128xf32>
    %cst_2 = arith.constant 0.000000e+00 : f32
    %19 = vector.broadcast %cst_2 : f32 to vector<16x128xf32>
    %20 = arith.select %15, %18, %19 : vector<16x128xi1>, vector<16x128xf32>
    %c0_3 = arith.constant 0 : index
    %c0_4 = arith.constant 0 : index
    %21 = vector.load %arg4[%c0_3, %c0_4] : memref<1x128xf32, #tpu.memory_space<vmem>>, vector<1x128xf32>
    %cst_5 = arith.constant dense<0.000000e+00> : vector<128xf32>
    %22 = vector.multi_reduction <add>, %20, %cst_5 [0] : vector<16x128xf32> to vector<128xf32>
    %23 = vector.shape_cast %22 : vector<128xf32> to vector<1x128xf32>
    %24 = arith.addf %21, %23 : vector<1x128xf32>
    %c0_6 = arith.constant 0 : index
    %c0_7 = arith.constant 0 : index
    %25 = vector.load %arg4[%c0_6, %c0_7] : memref<1x128xf32, #tpu.memory_space<vmem>>, vector<1x128xf32>
    tpu.vector_store %arg4[%c0_6, %c0_7], %24 {strides = array<i32>} : memref<1x128xf32, #tpu.memory_space<vmem>>, vector<1x128xf32>,
    %c0_i32_8 = arith.constant 0 : i32
    %26 = arith.cmpi eq, %arg1, %c0_i32_8 : i32
    %27 = arith.extui %26 : i1 to i32
    %c0_i32_9 = arith.constant 0 : i32
    %28 = arith.cmpi ne, %27, %c0_i32_9 : i32
    scf.if %28 {
      %c0_10 = arith.constant 0 : index
      %c0_11 = arith.constant 0 : index
      %29 = vector.load %arg4[%c0_10, %c0_11] : memref<1x128xf32, #tpu.memory_space<vmem>>, vector<1x128xf32>
      %30 = vector.shape_cast %29 : vector<1x128xf32> to vector<1x1x128xf32>
      %cst_12 = arith.constant dense<0.000000e+00> : vector<1xf32>
      %31 = vector.multi_reduction <add>, %30, %cst_12 [1, 2] : vector<1x1x128xf32> to vector<1xf32>
      %32 = vector.shape_cast %31 : vector<1xf32> to vector<1x1x1xf32>
      %33 = vector.extract %32[0, 0, 0] : f32 from vector<1x1x1xf32>
      %34 = vector.broadcast %33 : f32 to vector<1x1xf32>
      %c0_13 = arith.constant 0 : index
      %c0_14 = arith.constant 0 : index
      %35 = vector.load %arg3[%c0_13, %c0_14] : memref<1x1xf32, #tpu.memory_space<vmem>>, vector<1x1xf32>
      tpu.vector_store %arg3[%c0_13, %c0_14], %34 {strides = array<i32>} : memref<1x1xf32, #tpu.memory_space<vmem>>, vector<1x1xf32>,
    } else {
    }
    return
  }
  func.func @transform_0(%arg0: i32, %arg1: i32) -> (i32, i32) {
    %c1_i32 = arith.constant 1 : i32
    %0 = arith.muli %arg0, %c1_i32 : i32
    %1 = arith.addi %0, %arg1 : i32
    %c0_i32 = arith.constant 0 : i32
    %c0_i32_0 = arith.constant 0 : i32
    return %1, %c0_i32 : i32, i32
  }
  func.func @transform_1(%arg0: i32, %arg1: i32) -> (i32, i32) {
    %c0_i32 = arith.constant 0 : i32
    %c0_i32_0 = arith.constant 0 : i32
    return %arg0, %c0_i32 : i32, i32
  }
}

</mosaic_0001>

<llo_original>
// kernel: tpu_custom_call.1
$region0: #{tpu_custom_call.1}
  #allocation0 [shape = 'u32[]', space=smem, size = 0x4, offset = 0x4, fixed_abs, tag = 'smem constant byte address 0x4 - core index']
  #allocation1 [shape = 'u32[144,128]{1,0:T(1,128)}', space=vmem, size = 0x12000, scoped, tag = 'internal scratch']
  #allocation2 [shape = 'f32[1,128]{1,0:T(1,128)}', space=vmem, size = 0x200, scoped, tag = 'scratch operand']
  %s0 = inlined_call_operand.hbm [shape: f32[16,128], index: 0, kind: input, shape index: {}]
  %s1 = inlined_call_operand.hbm [shape: f32[1,1], index: 1, kind: output, shape index: {}]
  %s2 = sld [smem:[#allocation0]]
  $region26: #{tpu_custom_call.1} parent=0
    _
  %s4 = ssub.s32 1, %s2
  %s5 = scalar_select 0, %s4, %s2
  $region1: #{tpu_custom_call.1} parent=0
    #allocation3 [shape = 'u8[8192]{0}', space=vmem, size = 0x2000, scoped, tag = 'input window, operand 0, single buffered']
    #allocation4 [shape = 's32[1]{0}', space=sflag, size = 0x4, scoped, tag = 'scoped memory for tpu_custom_call.1']
    #allocation5 [shape = 's32[1]{0}', space=sflag, size = 0x4, scoped, tag = 'scoped memory for tpu_custom_call.1']
    #allocation6 [shape = 'u8[512]{0}', space=vmem, size = 0x400, scoped, tag = 'output window, operand 0, single buffered']
    %6 = vsyncpa [#allocation4], 0
    %7 = vsyncpa [#allocation5], 0
    // Predicated region
    $region2: #{tpu_custom_call.1} parent=1 // pred_check
      _
    $region3: #{tpu_custom_call.1} parent=1 // pred_check_branch
      %9 = sbr.rel (0) target = $region5
    $region4: #{tpu_custom_call.1} parent=1 // pred_region
      %s10 = sadd.s32 0, 0
      %s11 = smul.u32 2, %s10
      %s13 = ssub.s32 256, 256
      %14 = vsyncadd [#allocation4], %s13
      %s15 = smul.addr %s11, 128
      %s16 = scalar_lea.hbm %s0, %s15
      %s17 = sshll.u32 [#allocation3], 4
      %s18 = int_to_ptr.vmem [resolvable:$true] %s17
      %23 = dma.hbm_to_vmem [thread:$0]  %s16, 256, %s18, [#allocation4], 128, 128, 8
    $region5: #{tpu_custom_call.1} parent=1 // pred_fallthru
      _
    // Predicated region
    $region6: #{tpu_custom_call.1} parent=1 // pred_check
      _
    $region7: #{tpu_custom_call.1} parent=1 // pred_check_branch
      %25 = sbr.rel (0) target = $region9
    $region8: #{tpu_custom_call.1} parent=1 // pred_region
      %26 = dma.done [#allocation4], 256
    $region9: #{tpu_custom_call.1} parent=1 // pred_fallthru
      _
    %s27 = sadd.s32 0, 0
    %s28 = smul.u32 2, %s27
    %p29 = scmp.eq.s32.totalorder 0, 0
    // Predicated region
    $region10: #{tpu_custom_call.1} parent=1 // pred_check
      %p30 = pneg %p29
    $region11: #{tpu_custom_call.1} parent=1 // pred_check_branch
      %32 = sbr.rel (%p30) target = $region13
    $region12: #{tpu_custom_call.1} parent=1 // pred_region
      %33 = vst [vmem:[#allocation2] sm:$0x1] 0.0
    $region13: #{tpu_custom_call.1} parent=1 // pred_fallthru
      _
    %v34 = vld [vmem:[#allocation3] sm:$0xff]
    %v35 = vld [vmem:[#allocation3 + $0x8] sm:$0xff]
    %s36 = sadd.s32 0, 0
    %s37 = smul.u32 %s36, 16
    %v38 = vlaneseq
    %v39 = vshrl.u32 %v38, 7
    %v40 = vadd.s32 %v39, 8
    %v41 = vlaneseq
    %v42 = vand.u32 %v41, 127
    %v43 = vstv %s37
    %v44 = vadd.s32 %v43, %v39
    %v45 = vadd.s32 %v43, %v40
    %v46 = vmul.u32 %v44, 128
    %v47 = vmul.u32 %v45, 128
    %v48 = vadd.s32 %v46, %v42
    %v49 = vadd.s32 %v47, %v42
    %vm50 = vcmp.lt.s32.totalorder %v48, 2048
    %vm51 = vcmp.lt.s32.totalorder %v49, 2048
    %v52 = vsub.f32 %v34, 0.5
    %v53 = vsub.f32 %v35, 0.5
    %v54 = vand.u32 2147483647, %v52
    %v55 = vand.u32 2147483647, %v53
    %v56 = vsel %vm50, %v54, 0.0
    %v57 = vsel %vm51, %v55, 0.0
    %v58 = vld [vmem:[#allocation2] sm:$0x1]
    %v59 = vadd.f32 %v56, %v57
    %v60 = vrot.slane %v59, 4
    %v61 = vadd.f32 %v59, %v60
    %v62 = vrot.slane %v61, 2
    %v63 = vadd.f32 %v61, %v62
    %v64 = vrot.slane %v63, 1
    %v65 = vadd.f32 %v63, %v64
    %v66 = vadd.f32 %v58, %v65
    %67 = vst [vmem:[#allocation2] sm:$0x1] %v66
    // Predicated region
    $region14: #{tpu_custom_call.1} parent=1 // pred_check
      %p68 = pneg %p29
    $region15: #{tpu_custom_call.1} parent=1 // pred_check_branch
      %70 = sbr.rel (%p68) target = $region17
    $region16: #{tpu_custom_call.1} parent=1 // pred_region
      %v71 = vld [vmem:[#allocation2] sm:$0x1]
      %vm72 = vcmask 1040384
      %v73 = vsel %vm72, %v71, 0.0
      %74 = vadd.xlane.f32.xlu0 %v73
      %v75 = vpop.xlane.xlu0 %74
      %v76 = vrot.slane %v75, 4
      %v77 = vadd.f32 %v75, %v76
      %v78 = vrot.slane %v77, 2
      %v79 = vadd.f32 %v77, %v78
      %v80 = vrot.slane %v79, 1
      %v81 = vadd.f32 %v79, %v80
      %s82 = vtos %v81
      %v83 = vstv %s82
      %vm84 = vcmask 0
      %85 = vst.msk [vmem:[#allocation6] sm:$0x1] %vm84, %v83
    $region17: #{tpu_custom_call.1} parent=1 // pred_fallthru
      _
    // Predicated region
    $region18: #{tpu_custom_call.1} parent=1 // pred_check
      _
    $region19: #{tpu_custom_call.1} parent=1 // pred_check_branch
      %87 = sbr.rel (0) target = $region21
    $region20: #{tpu_custom_call.1} parent=1 // pred_region
      %s89 = ssub.s32 16, 16
      %90 = vsyncadd [#allocation5], %s89
      %s92 = sshll.u32 [#allocation6], 4
      %s93 = int_to_ptr.vmem [resolvable:$true] %s92
      %95 = dma.vmem_to_hbm [thread:$0]  %s93, 16, %s1, [#allocation5]
    $region21: #{tpu_custom_call.1} parent=1 // pred_fallthru
      _
    // Predicated region
    $region22: #{tpu_custom_call.1} parent=1 // pred_check
      _
    $region23: #{tpu_custom_call.1} parent=1 // pred_check_branch
      %97 = sbr.rel (0) target = $region25
    $region24: #{tpu_custom_call.1} parent=1 // pred_region
      %98 = dma.done [#allocation5], 16
    $region25: #{tpu_custom_call.1} parent=1 // pred_fallthru
      _
    %99 = vsyncpa [#allocation4], 1
    %100 = vsyncpa [#allocation5], 1

</llo_original>
